<compile_context>
chip_gen: v5e
topology: v5e:2x2
jax: 0.10.0
libtpu: 0.0.40
codegen_flags: <defaults>
</compile_context>

<pallas_src>
import functools

import numpy as np

import jax
import jax.numpy as jnp
from jax.experimental import pallas as pl
from jax.experimental.pallas import tpu as pltpu

K = 3  # the module's default kernel_size (pad = 1); the kernel is specialised to it.


# ---------------------------------------------------------------------------
# Fused [3x3 conv + bias + ChannelNorm2D + (relu | residual add)] kernel.
# One grid step = Th output rows of one batch element.
# ---------------------------------------------------------------------------
def _conv_norm_kernel(*refs, Wp, Th, eps, relu, add_identity, emit_record):
    (main_ref, top_ref, bot_ref, w_ref, bias_ref, gamma_ref, beta_ref,
     col_ref) = refs[:8]
    pos = 8
    id_ref = None
    if add_identity:
        id_ref = refs[pos]
        pos += 1
    out_ref = refs[pos]
    pos += 1
    rec_ref = refs[pos] if emit_record else None

    C = out_ref.shape[0]
    N = Th * Wp

    # Halo'd, column-reflect-padded row slab: padded rows [-1, Th] flattened on
    # lanes.  (+2 junk lanes so the last tap slice stays in bounds; those
    # columns never reach the output.)
    top = top_ref[...]                      # (C, Wp)   bf16
    main = main_ref[...]                    # (C, Th*Wp) bf16
    bot = bot_ref[...]                      # (C, Wp)
    pad2 = jnp.zeros((C, 2), main.dtype)
    slab = jnp.concatenate([top, main, bot, pad2], axis=1)

    # im2col: 9 statically shifted views stacked on the contraction axis, then a
    # single MXU matmul for the whole tile (K = 9*C, N = Th*Wp).
    taps = [slab[:, dy * Wp + dx: dy * Wp + dx + N]
            for dy in range(K) for dx in range(K)]
    patches = jnp.concatenate(taps, axis=0)                       # (9C, N) bf16

    acc = jnp.dot(w_ref[...], patches,
                  preferred_element_type=jnp.float32)             # (C, N) f32
    acc = acc + bias_ref[...]                                     # conv bias

    # ChannelNorm2D over the channel (sublane) axis; two-pass, unbiased variance
    # (torch.var default).  TODO(synk): C == 1 would be inf/nan in torch as well.
    inv_cm1 = 1.0 / (C - 1) if C > 1 else 1.0
    mu = jnp.mean(acc, axis=0, keepdims=True)
    xc = acc - mu
    var = jnp.sum(xc * xc, axis=0, keepdims=True) * inv_cm1
    y = gamma_ref[...] * (xc * jax.lax.rsqrt(var + eps)) + beta_ref[...]
    if relu:
        y = jnp.maximum(y, 0.0)

    # Re-emit in the reflect-padded row layout so the next stage can consume the
    # output directly: within every Wp-wide row chunk
    #   col 0   <- col 1   (left reflect)
    #   col c   <- col c-1 (1 <= c <= W)
    #   col W+1 <- col W-2 (right reflect)
    sr1 = jnp.concatenate([y[:, :1], y[:, :-1]], axis=1)          # y[p-1]
    sl1 = jnp.concatenate([y[:, 1:], y[:, -1:]], axis=1)          # y[p+1]
    sr3 = jnp.concatenate([y[:, :3], y[:, :-3]], axis=1)          # y[p-3]
    col = col_ref[...]                                            # (1, N) int32
    ypad = jnp.where(col == 0, sl1, jnp.where(col == Wp - 1, sr3, sr1))

    if add_identity:
        ypad = ypad + id_ref[...].astype(jnp.float32)             # residual add

    out_ref[...] = ypad.astype(out_ref.dtype)                     # single big store

    if rec_ref is not None:
        # Boundary-row record: rows {0, 1, Th-2, Th-1} of this tile, used by the
        # next stage's halo index_maps (rows Th-1 / 0 feed the neighbouring tiles,
        # rows 1 / Th-2 implement the H-direction reflection at the image border).
        o = ypad.astype(rec_ref.dtype)
        rec_ref[0] = o[:, 0:Wp]
        rec_ref[1] = o[:, Wp:2 * Wp]
        rec_ref[2] = o[:, (Th - 2) * Wp:(Th - 1) * Wp]
        rec_ref[3] = o[:, (Th - 1) * Wp:Th * Wp]


# ---------------------------------------------------------------------------
# One fused stage as a pallas_call.
# ---------------------------------------------------------------------------
def _conv_norm_stage(main_blk, rec, identity_blk, w2d, bias, gamma, beta,
                     colidx, *, nH, Th, Wp, eps, relu, out_dtype, emit_record,
                     vmem_limit):
    B, _, C, N = main_blk.shape

    def blk_idx(b, i):
        return (b, i, 0, 0)

    # Halo rows come out of the boundary-row record; the index maps also encode
    # the reflection at the top / bottom image border (row 1 / row H-2).
    def top_idx(b, i):
        return (b, jnp.where(i == 0, 0, i - 1), jnp.where(i == 0, 1, 3), 0, 0)

    def bot_idx(b, i):
        last = nH - 1
        return (b, jnp.where(i == last, last, i + 1),
                jnp.where(i == last, 2, 0), 0, 0)

    in_specs = [
        pl.BlockSpec((None, None, C, N), blk_idx),               # main row block
        pl.BlockSpec((None, None, None, C, Wp), top_idx),        # top halo row
        pl.BlockSpec((None, None, None, C, Wp), bot_idx),        # bottom halo row
        pl.BlockSpec((C, K * K * C), lambda b, i: (0, 0)),       # conv weights
        pl.BlockSpec((C, 1), lambda b, i: (0, 0)),               # conv bias
        pl.BlockSpec((C, 1), lambda b, i: (0, 0)),               # gamma
        pl.BlockSpec((C, 1), lambda b, i: (0, 0)),               # beta
        pl.BlockSpec((1, N), lambda b, i: (0, 0)),               # column-in-chunk idx
    ]
    args = [main_blk, rec, rec, w2d, bias, gamma, beta, colidx]
    if identity_blk is not None:
        in_specs.append(pl.BlockSpec((None, None, C, N), blk_idx))
        args.append(identity_blk)

    out_shape = [jax.ShapeDtypeStruct((B, nH, C, N), out_dtype)]
    out_specs = [pl.BlockSpec((None, None, C, N), blk_idx)]
    if emit_record:
        out_shape.append(jax.ShapeDtypeStruct((B, nH, 4, C, Wp), out_dtype))
        out_specs.append(
            pl.BlockSpec((None, None, 4, C, Wp), lambda b, i: (b, i, 0, 0, 0)))

    itemsize_out = jnp.dtype(out_dtype).itemsize
    bytes_acc = (main_blk.size * 2 + rec.size * 2
                 + (identity_blk.size * 2 if identity_blk is not None else 0)
                 + B * nH * C * N * itemsize_out)
    cost = pl.CostEstimate(
        flops=int(2 * (K * K * C) * C * N * B * nH + 12 * B * nH * C * N),
        transcendentals=int(B * nH * N),
        bytes_accessed=int(bytes_acc))

    kernel = functools.partial(
        _conv_norm_kernel, Wp=Wp, Th=Th, eps=eps, relu=relu,
        add_identity=identity_blk is not None, emit_record=emit_record)

    return pl.pallas_call(
        kernel,
        out_shape=tuple(out_shape) if emit_record else out_shape[0],
        grid_spec=pltpu.PrefetchScalarGridSpec(
            num_scalar_prefetch=0,
            grid=(B, nH),
            in_specs=in_specs,
            out_specs=tuple(out_specs) if emit_record else out_specs[0],
        ),
        compiler_params=pltpu.CompilerParams(
            dimension_semantics=("parallel", "parallel"),
            vmem_limit_bytes=vmem_limit,
        ),
        cost_estimate=cost,
    )(*args)


# ---------------------------------------------------------------------------
# Tile sizing (VMEM-budget aware, per TPU generation).
# ---------------------------------------------------------------------------
def _vmem_capacity_bytes():
    try:
        info = pltpu.get_tpu_info()
        for name in ("vmem_capacity_bytes", "vmem_size_bytes", "vmem_bytes"):
            v = getattr(info, name, None)
            if v:
                return int(v)
    except Exception:
        pass
    return 64 * 1024 * 1024  # v7x-safe fallback


def _pick_tile_rows(H, C, W, budget_bytes):
    Wp = W + 2
    divisors = [d for d in range(2, H + 1) if H % d == 0] or [H]

    def step_bytes(Th):
        N = Th * Wp
        blocks = 2 * (2 * C * N * 2 + C * N * 4 + 6 * C * Wp * 2 + N * 4)
        live = 9 * C * N * 2 + 6 * C * N * 4          # im2col patches + f32 temps
        weights = 2 * (9 * C * C * 2 + 3 * C * 4)
        return blocks + live + weights

    fit = [d for d in divisors if step_bytes(d) <= budget_bytes]
    if not fit:
        return divisors[0]
    small = [d for d in fit if d <= 64]
    return max(small) if small else min(fit)


# ---------------------------------------------------------------------------
# Public entry point: ResidualBlock.forward
# ---------------------------------------------------------------------------
def residual_block(x, w1, b1, gamma1, beta1, w2, b2, gamma2, beta2, *,
                   eps=1e-3, kernel_size=3):
    """x: (B, C, H, W); conv weights (C, C, 3, 3); biases (C,);
    gamma/beta (1, C, 1, 1).  Returns (B, C, H, W)."""
    assert kernel_size == K, "kernel specialised to the module default kernel_size=3"
    B, C, H, W = x.shape
    assert H >= 2 and W >= 2
    Wp = W + 2

    cap = _vmem_capacity_bytes()
    vmem_limit = int(min(cap * 3 // 4, 100 * 1024 * 1024))
    Th = _pick_tile_rows(H, C, W, budget_bytes=vmem_limit // 2)
    nH = H // Th
    N = Th * Wp

    # --- wrapper-side layout plumbing --------------------------------------
    # Column reflection is baked into the HBM layout (width Wp = W+2); row
    # reflection is handled by the halo-row index maps inside the kernels.
    xp = jnp.pad(x, ((0, 0), (0, 0), (0, 0), (1, 1)),
                 mode="reflect").astype(jnp.bfloat16)             # (B, C, H, Wp)
    xp_blk = (xp.reshape(B, C, nH, Th, Wp)
                .transpose(0, 2, 1, 3, 4)
                .reshape(B, nH, C, N))                            # (B, nH, C, Th*Wp)

    # Boundary-row record of the padded input (same format stage 1 emits for
    # its own output): rows {0, 1, Th-2, Th-1} of every row block.
    rsel = np.asarray([i * Th + r for i in range(nH)
                       for r in (0, 1, Th - 2, Th - 1)], dtype=np.int32)
    rec0 = (xp[:, :, rsel, :].reshape(B, C, nH, 4, Wp)
              .transpose(0, 2, 3, 1, 4))                          # (B, nH, 4, C, Wp)

    colidx = jnp.asarray(np.tile(np.arange(Wp, dtype=np.int32), Th))[None, :]

    def prep_w(w):  # (Cout, Cin, K, K) -> (Cout, K*K*Cin), tap-major / channel-minor
        return jnp.transpose(w, (0, 2, 3, 1)).reshape(C, K * K * C).astype(jnp.bfloat16)

    def prep_vec(v):
        return v.reshape(C, 1).astype(jnp.float32)

    # Stage 1: relu(norm1(conv1(pad(x)))) -- emitted reflect-padded + boundary record.
    h1_blk, rec1 = _conv_norm_stage(
        xp_blk, rec0, None, prep_w(w1), prep_vec(b1), prep_vec(gamma1),
        prep_vec(beta1), colidx, nH=nH, Th=Th, Wp=Wp, eps=eps, relu=True,
        out_dtype=jnp.bfloat16, emit_record=True, vmem_limit=vmem_limit)

    # Stage 2: norm2(conv2(pad(h1))) + x -- consumes stage 1's output directly.
    out_blk = _conv_norm_stage(
        h1_blk, rec1, xp_blk, prep_w(w2), prep_vec(b2), prep_vec(gamma2),
        prep_vec(beta2), colidx, nH=nH, Th=Th, Wp=Wp, eps=eps, relu=False,
        out_dtype=jnp.float32, emit_record=False, vmem_limit=vmem_limit)

    out = (out_blk.reshape(B, nH, C, Th, Wp)
                  .transpose(0, 2, 1, 3, 4)
                  .reshape(B, C, H, Wp))[..., 1:W + 1]
    return out


# ---------------------------------------------------------------------------
# Pure-JAX reference matching the PyTorch forward.
# ---------------------------------------------------------------------------
def residual_block_ref(x, w1, b1, gamma1, beta1, w2, b2, gamma2, beta2, *,
                       eps=1e-3):
    pad = (w1.shape[-1] - 1) // 2

    def pad_ref(a):
        return jnp.pad(a, ((0, 0), (0, 0), (pad, pad), (pad, pad)),
                       mode="reflect")

    def conv(a, w, b):
        o = jax.lax.conv_general_dilated(
            a, w, window_strides=(1, 1), padding="VALID",
            dimension_numbers=("NCHW", "OIHW", "NCHW"),
            precision=jax.lax.Precision.HIGHEST)
        return o + b.reshape(1, -1, 1, 1)

    def cnorm(a, g, be):
        mu = jnp.mean(a, axis=1, keepdims=True)
        var = jnp.var(a, axis=1, keepdims=True, ddof=1)   # unbiased, like torch.var
        return g * ((a - mu) * jax.lax.rsqrt(var + eps)) + be

    h = jax.nn.relu(cnorm(conv(pad_ref(x), w1, b1), gamma1, beta1))
    h = cnorm(conv(pad_ref(h), w2, b2), gamma2, beta2)
    return h + x


if __name__ == "__main__":
    key = jax.random.PRNGKey(0)
    ks = jax.random.split(key, 9)

    B, C, H, W = 2, 8, 16, 16

    def bf16_snap(a):
        # Keep the test data exactly bf16-representable so the check is not
        # dominated by the bf16 feeding of the MXU inside the kernel.
        return a.astype(jnp.bfloat16).astype(jnp.float32)

    x = bf16_snap(jax.random.normal(ks[0], (B, C, H, W), dtype=jnp.float32))

    bound = 1.0 / (C * K * K) ** 0.5  # torch conv default init scale
    w1 = bf16_snap(jax.random.uniform(ks[1], (C, C, K, K), jnp.float32, -bound, bound))
    b1 = bf16_snap(jax.random.uniform(ks[2], (C,), jnp.float32, -bound, bound))
    w2 = bf16_snap(jax.random.uniform(ks[3], (C, C, K, K), jnp.float32, -bound, bound))
    b2 = bf16_snap(jax.random.uniform(ks[4], (C,), jnp.float32, -bound, bound))

    gamma1 = bf16_snap(1.0 + 0.1 * jax.random.normal(ks[5], (1, C, 1, 1)))
    beta1 = bf16_snap(0.1 * jax.random.normal(ks[6], (1, C, 1, 1)))
    gamma2 = bf16_snap(1.0 + 0.1 * jax.random.normal(ks[7], (1, C, 1, 1)))
    beta2 = bf16_snap(0.1 * jax.random.normal(ks[8], (1, C, 1, 1)))

    out = residual_block(x, w1, b1, gamma1, beta1, w2, b2, gamma2, beta2,
                         eps=1e-3, kernel_size=K)
    out = jax.block_until_ready(out)

    ref = residual_block_ref(x, w1, b1, gamma1, beta1, w2, b2, gamma2, beta2,
                             eps=1e-3)
    assert out.shape == (B, C, H, W)
    # Tolerance covers the bf16 (MXU-native) intermediate vs the HIGHEST-precision
    # f32 XLA reference convolutions.
    max_err = jnp.max(jnp.abs(out - ref))
    assert jnp.allclose(out, ref, atol=2e-2, rtol=2e-2), (
        f"mismatch vs reference, max_abs_err={max_err}")
    print("KERNEL_OK")
</pallas_src>

<mosaic_0001>
module attributes {stable_mosaic.version = 11 : i64} {
  func.func @_conv_norm_kernel(%arg0: i32, %arg1: i32, %arg2: memref<1x1x8x288xbf16, #tpu.memory_space<vmem>>, %arg3: memref<1x1x1x8x18xbf16, #tpu.memory_space<vmem>>, %arg4: memref<1x1x1x8x18xbf16, #tpu.memory_space<vmem>>, %arg5: memref<8x72xbf16, #tpu.memory_space<vmem>>, %arg6: memref<8x1xf32, #tpu.memory_space<vmem>>, %arg7: memref<8x1xf32, #tpu.memory_space<vmem>>, %arg8: memref<8x1xf32, #tpu.memory_space<vmem>>, %arg9: memref<1x288xi32, #tpu.memory_space<vmem>>, %arg10: memref<1x1x8x288xbf16, #tpu.memory_space<vmem>>, %arg11: memref<1x1x4x8x18xbf16, #tpu.memory_space<vmem>>) attributes {dimension_semantics = [#tpu.dimension_semantics<parallel>, #tpu.dimension_semantics<parallel>], iteration_bounds = array<i64: 2, 1>, scalar_prefetch = 0 : i64, scratch_operands = 0 : i64, tpu.core_type = #tpu.core_type<tc>, window_params = [{transform_indices = @transform_0, window_bounds = array<i64: 1, 1, 8, 288>}, {transform_indices = @transform_1, window_bounds = array<i64: 1, 1, 1, 8, 18>}, {transform_indices = @transform_2, window_bounds = array<i64: 1, 1, 1, 8, 18>}, {pipeline_mode = #tpu.pipeline_mode<synchronous>, transform_indices = @transform_3, window_bounds = array<i64: 8, 72>}, {pipeline_mode = #tpu.pipeline_mode<synchronous>, transform_indices = @transform_4, window_bounds = array<i64: 8, 1>}, {pipeline_mode = #tpu.pipeline_mode<synchronous>, transform_indices = @transform_5, window_bounds = array<i64: 8, 1>}, {pipeline_mode = #tpu.pipeline_mode<synchronous>, transform_indices = @transform_6, window_bounds = array<i64: 8, 1>}, {pipeline_mode = #tpu.pipeline_mode<synchronous>, transform_indices = @transform_7, window_bounds = array<i64: 1, 288>}, {transform_indices = @transform_8, window_bounds = array<i64: 1, 1, 8, 288>}, {transform_indices = @transform_9, window_bounds = array<i64: 1, 1, 4, 8, 18>}]} {
    %c0 = arith.constant 0 : index
    %c0_0 = arith.constant 0 : index
    %c0_1 = arith.constant 0 : index
    %c0_2 = arith.constant 0 : index
    %c0_3 = arith.constant 0 : index
    %0 = vector.load %arg3[%c0, %c0_0, %c0_1, %c0_2, %c0_3] : memref<1x1x1x8x18xbf16, #tpu.memory_space<vmem>>, vector<1x1x1x8x18xbf16>
    %1 = vector.shape_cast %0 : vector<1x1x1x8x18xbf16> to vector<8x18xbf16>
    %c0_4 = arith.constant 0 : index
    %c0_5 = arith.constant 0 : index
    %c0_6 = arith.constant 0 : index
    %c0_7 = arith.constant 0 : index
    %2 = vector.load %arg2[%c0_4, %c0_5, %c0_6, %c0_7] : memref<1x1x8x288xbf16, #tpu.memory_space<vmem>>, vector<1x1x8x288xbf16>
    %3 = vector.shape_cast %2 : vector<1x1x8x288xbf16> to vector<8x288xbf16>
    %c0_8 = arith.constant 0 : index
    %c0_9 = arith.constant 0 : index
    %c0_10 = arith.constant 0 : index
    %c0_11 = arith.constant 0 : index
    %c0_12 = arith.constant 0 : index
    %4 = vector.load %arg4[%c0_8, %c0_9, %c0_10, %c0_11, %c0_12] : memref<1x1x1x8x18xbf16, #tpu.memory_space<vmem>>, vector<1x1x1x8x18xbf16>
    %5 = vector.shape_cast %4 : vector<1x1x1x8x18xbf16> to vector<8x18xbf16>
    %cst = arith.constant 0.000000e+00 : bf16
    %6 = vector.broadcast %cst : bf16 to vector<8x2xbf16>
    %7 = tpu.concatenate %1, %3, %5, %6 in 1 : vector<8x18xbf16>, vector<8x288xbf16>, vector<8x18xbf16>, vector<8x2xbf16> -> vector<8x326xbf16>
    %8 = vector.extract_strided_slice %7 {offsets = [0, 0], sizes = [8, 288], strides = [1, 1]} : vector<8x326xbf16> to vector<8x288xbf16>
    %9 = vector.extract_strided_slice %7 {offsets = [0, 1], sizes = [8, 288], strides = [1, 1]} : vector<8x326xbf16> to vector<8x288xbf16>
    %10 = vector.extract_strided_slice %7 {offsets = [0, 2], sizes = [8, 288], strides = [1, 1]} : vector<8x326xbf16> to vector<8x288xbf16>
    %11 = vector.extract_strided_slice %7 {offsets = [0, 18], sizes = [8, 288], strides = [1, 1]} : vector<8x326xbf16> to vector<8x288xbf16>
    %12 = vector.extract_strided_slice %7 {offsets = [0, 19], sizes = [8, 288], strides = [1, 1]} : vector<8x326xbf16> to vector<8x288xbf16>
    %13 = vector.extract_strided_slice %7 {offsets = [0, 20], sizes = [8, 288], strides = [1, 1]} : vector<8x326xbf16> to vector<8x288xbf16>
    %14 = vector.extract_strided_slice %7 {offsets = [0, 36], sizes = [8, 288], strides = [1, 1]} : vector<8x326xbf16> to vector<8x288xbf16>
    %15 = vector.extract_strided_slice %7 {offsets = [0, 37], sizes = [8, 288], strides = [1, 1]} : vector<8x326xbf16> to vector<8x288xbf16>
    %16 = vector.extract_strided_slice %7 {offsets = [0, 38], sizes = [8, 288], strides = [1, 1]} : vector<8x326xbf16> to vector<8x288xbf16>
    %17 = tpu.concatenate %8, %9, %10, %11, %12, %13, %14, %15, %16 in 0 : vector<8x288xbf16>, vector<8x288xbf16>, vector<8x288xbf16>, vector<8x288xbf16>, vector<8x288xbf16>, vector<8x288xbf16>, vector<8x288xbf16>, vector<8x288xbf16>, vector<8x288xbf16> -> vector<72x288xbf16>
    %c0_13 = arith.constant 0 : index
    %c0_14 = arith.constant 0 : index
    %18 = vector.load %arg5[%c0_13, %c0_14] : memref<8x72xbf16, #tpu.memory_space<vmem>>, vector<8x72xbf16>
    %cst_15 = arith.constant dense<0.000000e+00> : vector<8x288xf32>
    %19 = tpu.matmul %18, %17, %cst_15 {dimension_numbers = #tpu.dot_dimension_numbers<[1], [0], [0], [1], [0, 0, 1, 1], [], []>} : vector<8x72xbf16>, vector<72x288xbf16>, vector<8x288xf32> -> vector<8x288xf32>
    %c0_16 = arith.constant 0 : index
    %c0_17 = arith.constant 0 : index
    %20 = vector.load %arg6[%c0_16, %c0_17] : memref<8x1xf32, #tpu.memory_space<vmem>>, vector<8x1xf32>
    %21 = vector.broadcast %20 : vector<8x1xf32> to vector<8x288xf32>
    %22 = arith.addf %19, %21 : vector<8x288xf32>
    %cst_18 = arith.constant dense<0.000000e+00> : vector<288xf32>
    %23 = vector.multi_reduction <add>, %22, %cst_18 [0] : vector<8x288xf32> to vector<288xf32>
    %24 = vector.shape_cast %23 : vector<288xf32> to vector<1x288xf32>
    %cst_19 = arith.constant 8.000000e+00 : f32
    %25 = vector.broadcast %cst_19 : f32 to vector<1x288xf32>
    %26 = arith.divf %24, %25 : vector<1x288xf32>
    %27 = vector.broadcast %26 : vector<1x288xf32> to vector<8x288xf32>
    %28 = arith.subf %22, %27 : vector<8x288xf32>
    %29 = arith.mulf %28, %28 : vector<8x288xf32>
    %cst_20 = arith.constant dense<0.000000e+00> : vector<288xf32>
    %30 = vector.multi_reduction <add>, %29, %cst_20 [0] : vector<8x288xf32> to vector<288xf32>
    %31 = vector.shape_cast %30 : vector<288xf32> to vector<1x288xf32>
    %cst_21 = arith.constant 0.142857149 : f32
    %32 = vector.broadcast %cst_21 : f32 to vector<1x288xf32>
    %33 = arith.mulf %31, %32 : vector<1x288xf32>
    %c0_22 = arith.constant 0 : index
    %c0_23 = arith.constant 0 : index
    %34 = vector.load %arg7[%c0_22, %c0_23] : memref<8x1xf32, #tpu.memory_space<vmem>>, vector<8x1xf32>
    %cst_24 = arith.constant 1.000000e-03 : f32
    %35 = vector.broadcast %cst_24 : f32 to vector<1x288xf32>
    %36 = arith.addf %33, %35 : vector<1x288xf32>
    %37 = math.rsqrt %36 : vector<1x288xf32>
    %38 = vector.broadcast %37 : vector<1x288xf32> to vector<8x288xf32>
    %39 = arith.mulf %28, %38 : vector<8x288xf32>
    %40 = vector.broadcast %34 : vector<8x1xf32> to vector<8x288xf32>
    %41 = arith.mulf %40, %39 : vector<8x288xf32>
    %c0_25 = arith.constant 0 : index
    %c0_26 = arith.constant 0 : index
    %42 = vector.load %arg8[%c0_25, %c0_26] : memref<8x1xf32, #tpu.memory_space<vmem>>, vector<8x1xf32>
    %43 = vector.broadcast %42 : vector<8x1xf32> to vector<8x288xf32>
    %44 = arith.addf %41, %43 : vector<8x288xf32>
    %cst_27 = arith.constant 0.000000e+00 : f32
    %45 = vector.broadcast %cst_27 : f32 to vector<8x288xf32>
    %46 = arith.maximumf %44, %45 : vector<8x288xf32>
    %47 = vector.extract_strided_slice %46 {offsets = [0, 0], sizes = [8, 1], strides = [1, 1]} : vector<8x288xf32> to vector<8x1xf32>
    %48 = vector.extract_strided_slice %46 {offsets = [0, 0], sizes = [8, 287], strides = [1, 1]} : vector<8x288xf32> to vector<8x287xf32>
    %49 = tpu.concatenate %47, %48 in 1 : vector<8x1xf32>, vector<8x287xf32> -> vector<8x288xf32>
    %50 = vector.extract_strided_slice %46 {offsets = [0, 1], sizes = [8, 287], strides = [1, 1]} : vector<8x288xf32> to vector<8x287xf32>
    %51 = vector.extract_strided_slice %46 {offsets = [0, 287], sizes = [8, 1], strides = [1, 1]} : vector<8x288xf32> to vector<8x1xf32>
    %52 = tpu.concatenate %50, %51 in 1 : vector<8x287xf32>, vector<8x1xf32> -> vector<8x288xf32>
    %53 = vector.extract_strided_slice %46 {offsets = [0, 0], sizes = [8, 3], strides = [1, 1]} : vector<8x288xf32> to vector<8x3xf32>
    %54 = vector.extract_strided_slice %46 {offsets = [0, 0], sizes = [8, 285], strides = [1, 1]} : vector<8x288xf32> to vector<8x285xf32>
    %55 = tpu.concatenate %53, %54 in 1 : vector<8x3xf32>, vector<8x285xf32> -> vector<8x288xf32>
    %c0_28 = arith.constant 0 : index
    %c0_29 = arith.constant 0 : index
    %56 = vector.load %arg9[%c0_28, %c0_29] : memref<1x288xi32, #tpu.memory_space<vmem>>, vector<1x288xi32>
    %c0_i32 = arith.constant 0 : i32
    %57 = vector.broadcast %c0_i32 : i32 to vector<1x288xi32>
    %58 = arith.cmpi eq, %56, %57 : vector<1x288xi32>
    %c17_i32 = arith.constant 17 : i32
    %59 = vector.broadcast %c17_i32 : i32 to vector<1x288xi32>
    %60 = arith.cmpi eq, %56, %59 : vector<1x288xi32>
    %61 = vector.shape_cast %60 : vector<1x288xi1> to vector<1x288xi1>
    %62 = vector.broadcast %61 : vector<1x288xi1> to vector<8x288xi1>
    %63 = arith.select %62, %55, %49 : vector<8x288xi1>, vector<8x288xf32>
    %64 = vector.shape_cast %58 : vector<1x288xi1> to vector<1x288xi1>
    %65 = vector.broadcast %64 : vector<1x288xi1> to vector<8x288xi1>
    %66 = arith.select %65, %52, %63 : vector<8x288xi1>, vector<8x288xf32>
    %67 = arith.truncf %66 : vector<8x288xf32> to vector<8x288xbf16>
    %c0_30 = arith.constant 0 : index
    %c0_31 = arith.constant 0 : index
    %c0_32 = arith.constant 0 : index
    %c0_33 = arith.constant 0 : index
    %68 = vector.load %arg10[%c0_30, %c0_31, %c0_32, %c0_33] : memref<1x1x8x288xbf16, #tpu.memory_space<vmem>>, vector<1x1x8x288xbf16>
    %69 = vector.shape_cast %68 : vector<1x1x8x288xbf16> to vector<8x288xbf16>
    %70 = vector.shape_cast %67 : vector<8x288xbf16> to vector<1x1x8x288xbf16>
    tpu.vector_store %arg10[%c0_30, %c0_31, %c0_32, %c0_33], %70 {strides = array<i32>} : memref<1x1x8x288xbf16, #tpu.memory_space<vmem>>, vector<1x1x8x288xbf16>,
    %71 = arith.truncf %66 : vector<8x288xf32> to vector<8x288xbf16>
    %72 = vector.extract_strided_slice %71 {offsets = [0, 0], sizes = [8, 18], strides = [1, 1]} : vector<8x288xbf16> to vector<8x18xbf16>
    %c0_34 = arith.constant 0 : index
    %c0_35 = arith.constant 0 : index
    %c0_36 = arith.constant 0 : index
    %c0_37 = arith.constant 0 : index
    %c0_38 = arith.constant 0 : index
    %73 = vector.load %arg11[%c0_34, %c0_35, %c0_36, %c0_37, %c0_38] : memref<1x1x4x8x18xbf16, #tpu.memory_space<vmem>>, vector<1x1x1x8x18xbf16>
    %74 = vector.shape_cast %73 : vector<1x1x1x8x18xbf16> to vector<8x18xbf16>
    %75 = vector.shape_cast %72 : vector<8x18xbf16> to vector<1x1x1x8x18xbf16>
    tpu.vector_store %arg11[%c0_34, %c0_35, %c0_36, %c0_37, %c0_38], %75 {strides = array<i32>} : memref<1x1x4x8x18xbf16, #tpu.memory_space<vmem>>, vector<1x1x1x8x18xbf16>,
    %76 = vector.extract_strided_slice %71 {offsets = [0, 18], sizes = [8, 18], strides = [1, 1]} : vector<8x288xbf16> to vector<8x18xbf16>
    %c0_39 = arith.constant 0 : index
    %c0_40 = arith.constant 0 : index
    %c1 = arith.constant 1 : index
    %c0_41 = arith.constant 0 : index
    %c0_42 = arith.constant 0 : index
    %77 = vector.load %arg11[%c0_39, %c0_40, %c1, %c0_41, %c0_42] : memref<1x1x4x8x18xbf16, #tpu.memory_space<vmem>>, vector<1x1x1x8x18xbf16>
    %78 = vector.shape_cast %77 : vector<1x1x1x8x18xbf16> to vector<8x18xbf16>
    %79 = vector.shape_cast %76 : vector<8x18xbf16> to vector<1x1x1x8x18xbf16>
    tpu.vector_store %arg11[%c0_39, %c0_40, %c1, %c0_41, %c0_42], %79 {strides = array<i32>} : memref<1x1x4x8x18xbf16, #tpu.memory_space<vmem>>, vector<1x1x1x8x18xbf16>,
    %80 = vector.extract_strided_slice %71 {offsets = [0, 252], sizes = [8, 18], strides = [1, 1]} : vector<8x288xbf16> to vector<8x18xbf16>
    %c0_43 = arith.constant 0 : index
    %c0_44 = arith.constant 0 : index
    %c2 = arith.constant 2 : index
    %c0_45 = arith.constant 0 : index
    %c0_46 = arith.constant 0 : index
    %81 = vector.load %arg11[%c0_43, %c0_44, %c2, %c0_45, %c0_46] : memref<1x1x4x8x18xbf16, #tpu.memory_space<vmem>>, vector<1x1x1x8x18xbf16>
    %82 = vector.shape_cast %81 : vector<1x1x1x8x18xbf16> to vector<8x18xbf16>
    %83 = vector.shape_cast %80 : vector<8x18xbf16> to vector<1x1x1x8x18xbf16>
    tpu.vector_store %arg11[%c0_43, %c0_44, %c2, %c0_45, %c0_46], %83 {strides = array<i32>} : memref<1x1x4x8x18xbf16, #tpu.memory_space<vmem>>, vector<1x1x1x8x18xbf16>,
    %84 = vector.extract_strided_slice %71 {offsets = [0, 270], sizes = [8, 18], strides = [1, 1]} : vector<8x288xbf16> to vector<8x18xbf16>
    %c0_47 = arith.constant 0 : index
    %c0_48 = arith.constant 0 : index
    %c3 = arith.constant 3 : index
    %c0_49 = arith.constant 0 : index
    %c0_50 = arith.constant 0 : index
    %85 = vector.load %arg11[%c0_47, %c0_48, %c3, %c0_49, %c0_50] : memref<1x1x4x8x18xbf16, #tpu.memory_space<vmem>>, vector<1x1x1x8x18xbf16>
    %86 = vector.shape_cast %85 : vector<1x1x1x8x18xbf16> to vector<8x18xbf16>
    %87 = vector.shape_cast %84 : vector<8x18xbf16> to vector<1x1x1x8x18xbf16>
    tpu.vector_store %arg11[%c0_47, %c0_48, %c3, %c0_49, %c0_50], %87 {strides = array<i32>} : memref<1x1x4x8x18xbf16, #tpu.memory_space<vmem>>, vector<1x1x1x8x18xbf16>,
    return
  }
  func.func @transform_0(%arg0: i32, %arg1: i32) -> (i32, i32, i32, i32) {
    %c0_i32 = arith.constant 0 : i32
    %c0_i32_0 = arith.constant 0 : i32
    %c0_i32_1 = arith.constant 0 : i32
    return %arg0, %arg1, %c0_i32, %c0_i32_0 : i32, i32, i32, i32
  }
  func.func @transform_1(%arg0: i32, %arg1: i32) -> (i32, i32, i32, i32, i32) {
    %c0_i32 = arith.constant 0 : i32
    %0 = arith.cmpi eq, %arg1, %c0_i32 : i32
    %c1_i32 = arith.constant 1 : i32
    %1 = arith.subi %arg1, %c1_i32 : i32
    %c0_i32_0 = arith.constant 0 : i32
    %2 = arith.select %0, %c0_i32_0, %1 : i32
    %c0_i32_1 = arith.constant 0 : i32
    %3 = arith.cmpi eq, %arg1, %c0_i32_1 : i32
    %c1_i32_2 = arith.constant 1 : i32
    %c3_i32 = arith.constant 3 : i32
    %4 = arith.select %3, %c1_i32_2, %c3_i32 : i32
    %c0_i32_3 = arith.constant 0 : i32
    %c0_i32_4 = arith.constant 0 : i32
    %c0_i32_5 = arith.constant 0 : i32
    return %arg0, %2, %4, %c0_i32_3, %c0_i32_4 : i32, i32, i32, i32, i32
  }
  func.func @transform_2(%arg0: i32, %arg1: i32) -> (i32, i32, i32, i32, i32) {
    %c0_i32 = arith.constant 0 : i32
    %0 = arith.cmpi eq, %arg1, %c0_i32 : i32
    %c1_i32 = arith.constant 1 : i32
    %1 = arith.addi %arg1, %c1_i32 : i32
    %c0_i32_0 = arith.constant 0 : i32
    %2 = arith.select %0, %c0_i32_0, %1 : i32
    %c0_i32_1 = arith.constant 0 : i32
    %3 = arith.cmpi eq, %arg1, %c0_i32_1 : i32
    %c2_i32 = arith.constant 2 : i32
    %c0_i32_2 = arith.constant 0 : i32
    %4 = arith.select %3, %c2_i32, %c0_i32_2 : i32
    %c0_i32_3 = arith.constant 0 : i32
    %c0_i32_4 = arith.constant 0 : i32
    %c0_i32_5 = arith.constant 0 : i32
    return %arg0, %2, %4, %c0_i32_3, %c0_i32_4 : i32, i32, i32, i32, i32
  }
  func.func @transform_3(%arg0: i32, %arg1: i32) -> (i32, i32) {
    %c0_i32 = arith.constant 0 : i32
    %c0_i32_0 = arith.constant 0 : i32
    %c0_i32_1 = arith.constant 0 : i32
    return %c0_i32, %c0_i32_0 : i32, i32
  }
  func.func @transform_4(%arg0: i32, %arg1: i32) -> (i32, i32) {
    %c0_i32 = arith.constant 0 : i32
    %c0_i32_0 = arith.constant 0 : i32
    %c0_i32_1 = arith.constant 0 : i32
    return %c0_i32, %c0_i32_0 : i32, i32
  }
  func.func @transform_5(%arg0: i32, %arg1: i32) -> (i32, i32) {
    %c0_i32 = arith.constant 0 : i32
    %c0_i32_0 = arith.constant 0 : i32
    %c0_i32_1 = arith.constant 0 : i32
    return %c0_i32, %c0_i32_0 : i32, i32
  }
  func.func @transform_6(%arg0: i32, %arg1: i32) -> (i32, i32) {
    %c0_i32 = arith.constant 0 : i32
    %c0_i32_0 = arith.constant 0 : i32
    %c0_i32_1 = arith.constant 0 : i32
    return %c0_i32, %c0_i32_0 : i32, i32
  }
  func.func @transform_7(%arg0: i32, %arg1: i32) -> (i32, i32) {
    %c0_i32 = arith.constant 0 : i32
    %c0_i32_0 = arith.constant 0 : i32
    %c0_i32_1 = arith.constant 0 : i32
    return %c0_i32, %c0_i32_0 : i32, i32
  }
  func.func @transform_8(%arg0: i32, %arg1: i32) -> (i32, i32, i32, i32) {
    %c0_i32 = arith.constant 0 : i32
    %c0_i32_0 = arith.constant 0 : i32
    %c0_i32_1 = arith.constant 0 : i32
    return %arg0, %arg1, %c0_i32, %c0_i32_0 : i32, i32, i32, i32
  }
  func.func @transform_9(%arg0: i32, %arg1: i32) -> (i32, i32, i32, i32, i32) {
    %c0_i32 = arith.constant 0 : i32
    %c0_i32_0 = arith.constant 0 : i32
    %c0_i32_1 = arith.constant 0 : i32
    %c0_i32_2 = arith.constant 0 : i32
    return %arg0, %arg1, %c0_i32, %c0_i32_0, %c0_i32_1 : i32, i32, i32, i32, i32
  }
}

</mosaic_0001>

<llo_original>
// kernel: tpu_custom_call.1
$region0: #{tpu_custom_call.1}
  #allocation0 [shape = 'u32[]', space=smem, size = 0x4, offset = 0x4, fixed_abs, tag = 'smem constant byte address 0x4 - core index']
  #allocation1 [shape = 'u32[72,128]{1,0:T(1,128)}', space=vmem, size = 0x9000, scoped, tag = 'internal scratch']
  %s0 = inlined_call_operand.vmem [shape: bf16[2,1,8,288], index: 0, kind: input, shape index: {}]
  %s1 = inlined_call_operand.hbm [shape: bf16[2,1,4,8,18], index: 1, kind: input, shape index: {}]
  %s2 = inlined_call_operand.hbm [shape: bf16[2,1,4,8,18], index: 2, kind: input, shape index: {}]
  %s3 = inlined_call_operand.vmem [shape: bf16[8,72], index: 3, kind: input, shape index: {}]
  %s4 = inlined_call_operand.vmem [shape: f32[8,1], index: 4, kind: input, shape index: {}]
  %s5 = inlined_call_operand.vmem [shape: f32[8,1], index: 5, kind: input, shape index: {}]
  %s6 = inlined_call_operand.vmem [shape: f32[8,1], index: 6, kind: input, shape index: {}]
  %s7 = inlined_call_operand.vmem [shape: s32[1,288], index: 7, kind: input, shape index: {}]
  %s8 = inlined_call_operand.hbm [shape: bf16[2,1,8,288], index: 8, kind: output, shape index: {0}]
  %s9 = inlined_call_operand.hbm [shape: bf16[2,1,4,8,18], index: 9, kind: output, shape index: {1}]
  %10 = xla_tuple %s8, %s9
  %s11 = sld [smem:[#allocation0]]
  $region81: #{tpu_custom_call.1} parent=0
    _
  %s13 = ssub.s32 1, %s11
  %s14 = scalar_select 0, %s13, %s11
  $region1: #{tpu_custom_call.1} parent=0
    #allocation2 [shape = 'u8[4096]{0}', space=vmem, size = 0x1000, scoped, tag = 'input window, operand 1']
    #allocation3 [shape = 's32[2]{0}', space=sflag, size = 0x8, scoped, tag = 'scoped memory for tpu_custom_call.1']
    #allocation4 [shape = 's32[2]{0}', space=sflag, size = 0x8, scoped, tag = 'scoped memory for tpu_custom_call.1']
    #allocation5 [shape = 'u8[4096]{0}', space=vmem, size = 0x1000, scoped, tag = 'input window, operand 2']
    #allocation6 [shape = 's32[2]{0}', space=sflag, size = 0x8, scoped, tag = 'scoped memory for tpu_custom_call.1']
    #allocation7 [shape = 'u8[12288]{0}', space=vmem, size = 0x3000, scoped, tag = 'output window, operand 0']
    #allocation8 [shape = 'u8[16384]{0}', space=vmem, size = 0x4000, scoped, tag = 'output window, operand 1']
    #allocation9 [shape = 's32[2]{0}', space=sflag, size = 0x8, scoped, tag = 'scoped memory for tpu_custom_call.1']
    %15 = vsyncpa [#allocation3], 0
    %s16 = scalar_lea.sflag [#allocation3], 1
    %17 = vsyncpa %s16, 0
    %18 = vsyncpa [#allocation6], 0
    %s19 = scalar_lea.sflag [#allocation6], 1
    %20 = vsyncpa %s19, 0
    %21 = vsyncpa [#allocation4], 0
    %s22 = scalar_lea.sflag [#allocation4], 1
    %23 = vsyncpa %s22, 0
    %24 = vsyncpa [#allocation9], 0
    %s25 = scalar_lea.sflag [#allocation9], 1
    %26 = vsyncpa %s25, 0
    loop: start=0, step=1, limit=4
    $region2: #{tpu_custom_call.1} parent=1 // loop_pre_header
      _
    $region3: #{tpu_custom_call.1} parent=1 // loop_header
      %s28 = sphi 0, %s32
      %p29 = scmp.ge.s32.totalorder %s28, 4
      %s35 = sphi 0, %s47
      %s36 = sphi 0, %s43
      %s37 = sphi 0, %s35
      %s38 = sphi 0, %s36
      %s39 = sphi 0, %s37
      %s40 = sphi 0, %s38
      %s52 = sphi 0, %s54
      %s55 = sphi 0, %s52
      %s56 = sphi 0, %s55
      %s72 = sphi 0, %s56
      %s90 = sphi 0, %s92
      %s93 = sphi 0, %s90
      %s94 = sphi 0, %s93
      %s110 = sphi 0, %s94
      %s128 = sphi 0, %s130
      %s131 = sphi 0, %s128
      %s132 = sphi 0, %s131
      %s148 = sphi 0, %s132
      %s152 = sphi 0, %s152
      %s154 = sphi 0, %s152
      %s155 = sphi 0, %s154
      %s169 = sphi 0, %s155
      %s173 = sphi 0, %s173
      %s175 = sphi 0, %s173
      %s176 = sphi 0, %s175
      %s190 = sphi 0, %s176
      %s194 = sphi 0, %s194
      %s196 = sphi 0, %s194
      %s197 = sphi 0, %s196
      %s211 = sphi 0, %s197
      %s215 = sphi 0, %s215
      %s217 = sphi 0, %s215
      %s218 = sphi 0, %s217
      %s232 = sphi 0, %s218
      %s236 = sphi 0, %s236
      %s238 = sphi 0, %s236
      %s239 = sphi 0, %s238
      %s253 = sphi 0, %s239
      %s261 = sphi 0, %s263
      %s264 = sphi 0, %s261
      %s265 = sphi 0, %s264
      %s281 = sphi 0, %s265
      %s289 = sphi 0, %s291
      %s292 = sphi 0, %s289
      %s293 = sphi 0, %s292
      %s309 = sphi 0, %s293
    $region4: #{tpu_custom_call.1} parent=1 // loop_header_branch
      %31 = sbr.rel (%p29) target = $region8
    $region5: #{tpu_custom_call.1} parent=1 // loop_body
      %s33 = ssub.s32 %s28, 1
      %s34 = ssub.s32 %s28, 2
      %s41 = sadd.s32 1, %s36
      %p42 = scmp.ge.s32.totalorder %s41, 1
      %s43 = scalar_select %p42, 0, %s41
      %s44 = sadd.s32 1, %s35
      %s45 = scalar_select %p42, %s44, %s35
      %p46 = scmp.ge.s32.totalorder %s45, 2
      %s47 = scalar_select %p46, 0, %s45
      %s48 = ssub.s32 %s35, %s47
      %s49 = ssub.s32 %s36, %s43
      %s50 = sor.u32 %s48, %s49
      %p51 = scmp.eq.s32.totalorder %s50, 0
      %s53 = sadd.s32 %s52, 1
      %s54 = scalar_select %p51, %s52, %s53
      %p57 = pneg %p51
      %p58 = scmp.eq.s32.totalorder %s28, 1
      %p59 = por %p57, %p58
      %p60 = scmp.ne.s32.totalorder %s52, %s55
      %p61 = scmp.eq.s32.totalorder %s28, 0
      %p62 = por %p60, %p61
      %p63 = scmp.ne.s32.totalorder %s52, %s55
      %p64 = scmp.eq.s32.totalorder %s33, 1
      %p65 = por %p63, %p64
      %p66 = scmp.ne.s32.totalorder %s55, %s56
      %p67 = scmp.eq.s32.totalorder %s33, 0
      %p68 = por %p66, %p67
      %p69 = scmp.ne.s32.totalorder %s55, %s56
      %p70 = scmp.eq.s32.totalorder %s34, 1
      %p71 = por %p69, %p70
      %p73 = scmp.ne.s32.totalorder %s56, %s72
      %p74 = scmp.eq.s32.totalorder %s34, 0
      %p75 = por %p73, %p74
      %p76 = scmp.eq.s32.totalorder %s36, 0
      %s77 = ssub.s32 %s36, 1
      %s78 = scalar_select %p76, 0, %s77
      %s79 = scalar_select %p76, 1, 3
      %p80 = scmp.eq.s32.totalorder %s43, 0
      %s81 = ssub.s32 %s43, 1
      %s82 = scalar_select %p80, 0, %s81
      %s83 = scalar_select %p80, 1, 3
      %s84 = ssub.s32 %s35, %s47
      %s85 = ssub.s32 %s78, %s82
      %s86 = sor.u32 %s84, %s85
      %s87 = ssub.s32 %s79, %s83
      %s88 = sor.u32 %s86, %s87
      %p89 = scmp.eq.s32.totalorder %s88, 0
      %s91 = sadd.s32 %s90, 1
      %s92 = scalar_select %p89, %s90, %s91
      %p95 = pneg %p89
      %p96 = scmp.eq.s32.totalorder %s28, 1
      %p97 = por %p95, %p96
      %p98 = scmp.ne.s32.totalorder %s90, %s93
      %p99 = scmp.eq.s32.totalorder %s28, 0
      %p100 = por %p98, %p99
      %p101 = scmp.ne.s32.totalorder %s90, %s93
      %p102 = scmp.eq.s32.totalorder %s33, 1
      %p103 = por %p101, %p102
      %p104 = scmp.ne.s32.totalorder %s93, %s94
      %p105 = scmp.eq.s32.totalorder %s33, 0
      %p106 = por %p104, %p105
      %p107 = scmp.ne.s32.totalorder %s93, %s94
      %p108 = scmp.eq.s32.totalorder %s34, 1
      %p109 = por %p107, %p108
      %p111 = scmp.ne.s32.totalorder %s94, %s110
      %p112 = scmp.eq.s32.totalorder %s34, 0
      %p113 = por %p111, %p112
      %p114 = scmp.eq.s32.totalorder %s36, 0
      %s115 = sadd.s32 %s36, 1
      %s116 = scalar_select %p114, 0, %s115
      %s117 = scalar_select %p114, 2, 0
      %p118 = scmp.eq.s32.totalorder %s43, 0
      %s119 = sadd.s32 %s43, 1
      %s120 = scalar_select %p118, 0, %s119
      %s121 = scalar_select %p118, 2, 0
      %s122 = ssub.s32 %s35, %s47
      %s123 = ssub.s32 %s116, %s120
      %s124 = sor.u32 %s122, %s123
      %s125 = ssub.s32 %s117, %s121
      %s126 = sor.u32 %s124, %s125
      %p127 = scmp.eq.s32.totalorder %s126, 0
      %s129 = sadd.s32 %s128, 1
      %s130 = scalar_select %p127, %s128, %s129
      %p133 = pneg %p127
      %p134 = scmp.eq.s32.totalorder %s28, 1
      %p135 = por %p133, %p134
      %p136 = scmp.ne.s32.totalorder %s128, %s131
      %p137 = scmp.eq.s32.totalorder %s28, 0
      %p138 = por %p136, %p137
      %p139 = scmp.ne.s32.totalorder %s128, %s131
      %p140 = scmp.eq.s32.totalorder %s33, 1
      %p141 = por %p139, %p140
      %p142 = scmp.ne.s32.totalorder %s131, %s132
      %p143 = scmp.eq.s32.totalorder %s33, 0
      %p144 = por %p142, %p143
      %p145 = scmp.ne.s32.totalorder %s131, %s132
      %p146 = scmp.eq.s32.totalorder %s34, 1
      %p147 = por %p145, %p146
      %p149 = scmp.ne.s32.totalorder %s132, %s148
      %p150 = scmp.eq.s32.totalorder %s34, 0
      %p151 = por %p149, %p150
      %s153 = sadd.s32 %s152, 1
      %p156 = scmp.eq.s32.totalorder %s28, 1
      %p157 = scmp.ne.s32.totalorder %s152, %s154
      %p158 = scmp.eq.s32.totalorder %s28, 0
      %p159 = por %p157, %p158
      %p160 = scmp.ne.s32.totalorder %s152, %s154
      %p161 = scmp.eq.s32.totalorder %s33, 1
      %p162 = por %p160, %p161
      %p163 = scmp.ne.s32.totalorder %s154, %s155
      %p164 = scmp.eq.s32.totalorder %s33, 0
      %p165 = por %p163, %p164
      %p166 = scmp.ne.s32.totalorder %s154, %s155
      %p167 = scmp.eq.s32.totalorder %s34, 1
      %p168 = por %p166, %p167
      %p170 = scmp.ne.s32.totalorder %s155, %s169
      %p171 = scmp.eq.s32.totalorder %s34, 0
      %p172 = por %p170, %p171
      %s174 = sadd.s32 %s173, 1
      %p177 = scmp.eq.s32.totalorder %s28, 1
      %p178 = scmp.ne.s32.totalorder %s173, %s175
      %p179 = scmp.eq.s32.totalorder %s28, 0
      %p180 = por %p178, %p179
      %p181 = scmp.ne.s32.totalorder %s173, %s175
      %p182 = scmp.eq.s32.totalorder %s33, 1
      %p183 = por %p181, %p182
      %p184 = scmp.ne.s32.totalorder %s175, %s176
      %p185 = scmp.eq.s32.totalorder %s33, 0
      %p186 = por %p184, %p185
      %p187 = scmp.ne.s32.totalorder %s175, %s176
      %p188 = scmp.eq.s32.totalorder %s34, 1
      %p189 = por %p187, %p188
      %p191 = scmp.ne.s32.totalorder %s176, %s190
      %p192 = scmp.eq.s32.totalorder %s34, 0
      %p193 = por %p191, %p192
      %s195 = sadd.s32 %s194, 1
      %p198 = scmp.eq.s32.totalorder %s28, 1
      %p199 = scmp.ne.s32.totalorder %s194, %s196
      %p200 = scmp.eq.s32.totalorder %s28, 0
      %p201 = por %p199, %p200
      %p202 = scmp.ne.s32.totalorder %s194, %s196
      %p203 = scmp.eq.s32.totalorder %s33, 1
      %p204 = por %p202, %p203
      %p205 = scmp.ne.s32.totalorder %s196, %s197
      %p206 = scmp.eq.s32.totalorder %s33, 0
      %p207 = por %p205, %p206
      %p208 = scmp.ne.s32.totalorder %s196, %s197
      %p209 = scmp.eq.s32.totalorder %s34, 1
      %p210 = por %p208, %p209
      %p212 = scmp.ne.s32.totalorder %s197, %s211
      %p213 = scmp.eq.s32.totalorder %s34, 0
      %p214 = por %p212, %p213
      %s216 = sadd.s32 %s215, 1
      %p219 = scmp.eq.s32.totalorder %s28, 1
      %p220 = scmp.ne.s32.totalorder %s215, %s217
      %p221 = scmp.eq.s32.totalorder %s28, 0
      %p222 = por %p220, %p221
      %p223 = scmp.ne.s32.totalorder %s215, %s217
      %p224 = scmp.eq.s32.totalorder %s33, 1
      %p225 = por %p223, %p224
      %p226 = scmp.ne.s32.totalorder %s217, %s218
      %p227 = scmp.eq.s32.totalorder %s33, 0
      %p228 = por %p226, %p227
      %p229 = scmp.ne.s32.totalorder %s217, %s218
      %p230 = scmp.eq.s32.totalorder %s34, 1
      %p231 = por %p229, %p230
      %p233 = scmp.ne.s32.totalorder %s218, %s232
      %p234 = scmp.eq.s32.totalorder %s34, 0
      %p235 = por %p233, %p234
      %s237 = sadd.s32 %s236, 1
      %p240 = scmp.eq.s32.totalorder %s28, 1
      %p241 = scmp.ne.s32.totalorder %s236, %s238
      %p242 = scmp.eq.s32.totalorder %s28, 0
      %p243 = por %p241, %p242
      %p244 = scmp.ne.s32.totalorder %s236, %s238
      %p245 = scmp.eq.s32.totalorder %s33, 1
      %p246 = por %p244, %p245
      %p247 = scmp.ne.s32.totalorder %s238, %s239
      %p248 = scmp.eq.s32.totalorder %s33, 0
      %p249 = por %p247, %p248
      %p250 = scmp.ne.s32.totalorder %s238, %s239
      %p251 = scmp.eq.s32.totalorder %s34, 1
      %p252 = por %p250, %p251
      %p254 = scmp.ne.s32.totalorder %s239, %s253
      %p255 = scmp.eq.s32.totalorder %s34, 0
      %p256 = por %p254, %p255
      %s257 = ssub.s32 %s35, %s47
      %s258 = ssub.s32 %s36, %s43
      %s259 = sor.u32 %s257, %s258
      %p260 = scmp.eq.s32.totalorder %s259, 0
      %s262 = sadd.s32 %s261, 1
      %s263 = scalar_select %p260, %s261, %s262
      %p266 = pneg %p260
      %p267 = scmp.eq.s32.totalorder %s28, 1
      %p268 = por %p266, %p267
      %p269 = scmp.ne.s32.totalorder %s261, %s264
      %p270 = scmp.eq.s32.totalorder %s28, 0
      %p271 = por %p269, %p270
      %p272 = scmp.ne.s32.totalorder %s261, %s264
      %p273 = scmp.eq.s32.totalorder %s33, 1
      %p274 = por %p272, %p273
      %p275 = scmp.ne.s32.totalorder %s264, %s265
      %p276 = scmp.eq.s32.totalorder %s33, 0
      %p277 = por %p275, %p276
      %p278 = scmp.ne.s32.totalorder %s264, %s265
      %p279 = scmp.eq.s32.totalorder %s34, 1
      %p280 = por %p278, %p279
      %p282 = scmp.ne.s32.totalorder %s265, %s281
      %p283 = scmp.eq.s32.totalorder %s34, 0
      %p284 = por %p282, %p283
      %s285 = ssub.s32 %s35, %s47
      %s286 = ssub.s32 %s36, %s43
      %s287 = sor.u32 %s285, %s286
      %p288 = scmp.eq.s32.totalorder %s287, 0
      %s290 = sadd.s32 %s289, 1
      %s291 = scalar_select %p288, %s289, %s290
      %p294 = pneg %p288
      %p295 = scmp.eq.s32.totalorder %s28, 1
      %p296 = por %p294, %p295
      %p297 = scmp.ne.s32.totalorder %s289, %s292
      %p298 = scmp.eq.s32.totalorder %s28, 0
      %p299 = por %p297, %p298
      %p300 = scmp.ne.s32.totalorder %s289, %s292
      %p301 = scmp.eq.s32.totalorder %s33, 1
      %p302 = por %p300, %p301
      %p303 = scmp.ne.s32.totalorder %s292, %s293
      %p304 = scmp.eq.s32.totalorder %s33, 0
      %p305 = por %p303, %p304
      %p306 = scmp.ne.s32.totalorder %s292, %s293
      %p307 = scmp.eq.s32.totalorder %s34, 1
      %p308 = por %p306, %p307
      %p310 = scmp.ne.s32.totalorder %s293, %s309
      %p311 = scmp.eq.s32.totalorder %s34, 0
      %p312 = por %p310, %p311
      %p313 = scmp.le.s32.totalorder 1, %s28
      %p314 = scmp.lt.s32.totalorder %s28, 3
      %p315 = pnand %p313, %p314
      %p316 = pneg %p315
      // Predicated region
      $region9: #{tpu_custom_call.1} parent=5 // pred_check
        _
      $region10: #{tpu_custom_call.1} parent=5 // pred_check_branch
        %318 = sbr.rel (%p315) target = $region12
      $region11: #{tpu_custom_call.1} parent=5 // pred_region
        %s319 = ssub.s32 %s28, 1
        // Predicated region
        $region13: #{tpu_custom_call.1} parent=11 // pred_check
          %p320 = pneg %p165
        $region14: #{tpu_custom_call.1} parent=11 // pred_check_branch
          %322 = sbr.rel (%p320) target = $region16
        $region15: #{tpu_custom_call.1} parent=11 // pred_region
          _
        $region16: #{tpu_custom_call.1} parent=11 // pred_fallthru
          _
        // Predicated region
        $region17: #{tpu_custom_call.1} parent=11 // pred_check
          %p323 = pneg %p186
        $region18: #{tpu_custom_call.1} parent=11 // pred_check_branch
          %325 = sbr.rel (%p323) target = $region20
        $region19: #{tpu_custom_call.1} parent=11 // pred_region
          _
        $region20: #{tpu_custom_call.1} parent=11 // pred_fallthru
          _
        // Predicated region
        $region21: #{tpu_custom_call.1} parent=11 // pred_check
          %p326 = pneg %p207
        $region22: #{tpu_custom_call.1} parent=11 // pred_check_branch
          %328 = sbr.rel (%p326) target = $region24
        $region23: #{tpu_custom_call.1} parent=11 // pred_region
          _
        $region24: #{tpu_custom_call.1} parent=11 // pred_fallthru
          _
        // Predicated region
        $region25: #{tpu_custom_call.1} parent=11 // pred_check
          %p329 = pneg %p228
        $region26: #{tpu_custom_call.1} parent=11 // pred_check_branch
          %331 = sbr.rel (%p329) target = $region28
        $region27: #{tpu_custom_call.1} parent=11 // pred_region
          _
        $region28: #{tpu_custom_call.1} parent=11 // pred_fallthru
          _
        // Predicated region
        $region29: #{tpu_custom_call.1} parent=11 // pred_check
          %p332 = pneg %p249
        $region30: #{tpu_custom_call.1} parent=11 // pred_check_branch
          %334 = sbr.rel (%p332) target = $region32
        $region31: #{tpu_custom_call.1} parent=11 // pred_region
          _
        $region32: #{tpu_custom_call.1} parent=11 // pred_fallthru
          _
      $region12: #{tpu_custom_call.1} parent=5 // pred_fallthru
        _
      %p335 = scmp.lt.s32.totalorder %s28, 2
      // Predicated region
      $region33: #{tpu_custom_call.1} parent=5 // pred_check
        %p336 = pneg %p335
      $region34: #{tpu_custom_call.1} parent=5 // pred_check_branch
        %338 = sbr.rel (%p336) target = $region36
      $region35: #{tpu_custom_call.1} parent=5 // pred_region
        // Predicated region
        $region37: #{tpu_custom_call.1} parent=35 // pred_check
          %p339 = pneg %p62
        $region38: #{tpu_custom_call.1} parent=35 // pred_check_branch
          %341 = sbr.rel (%p339) target = $region40
        $region39: #{tpu_custom_call.1} parent=35 // pred_region
          %p342 = scmp.lt.s32.totalorder %s35, 1
          %s343 = scalar_select %p342, %s35, 1
          %p344 = scmp.lt.s32.totalorder %s36, 0
          %s345 = scalar_select %p344, %s36, 0
          %s346 = smul.addr %s345, 3
          %s347 = smul.addr %s343, 3
          %s348 = sadd.s32 %s346, %s347
          %s349 = smul.addr %s348, 4
          %s350 = scalar_lea.vmem %s0, %s349
        $region40: #{tpu_custom_call.1} parent=35 // pred_fallthru
          _
        // Predicated region
        $region41: #{tpu_custom_call.1} parent=35 // pred_check
          %p351 = pneg %p100
        $region42: #{tpu_custom_call.1} parent=35 // pred_check_branch
          %353 = sbr.rel (%p351) target = $region44
        $region43: #{tpu_custom_call.1} parent=35 // pred_region
          %s354 = sand.u32 %s90, 1
          %s355 = scalar_lea.sflag [#allocation3], %s354
          %s356 = sand.u32 %s90, 1
          %s357 = smul.addr %s356, 4
          %s358 = scalar_lea.vmem [#allocation2], %s357
          %p359 = scmp.eq.s32.totalorder %s36, 0
          %s360 = ssub.s32 %s36, 1
          %s361 = scalar_select %p359, 0, %s360
          %s362 = scalar_select %p359, 1, 3
          %364 = vsyncadd %s355, 0
          %s365 = smul.addr %s361, 4
          %s366 = sadd.s32 %s362, %s365
          %s367 = smul.addr %s35, 4
          %s368 = sadd.s32 %s366, %s367
          %s369 = smul.addr %s368, 4
          %s370 = scalar_lea.hbm %s1, %s369
          %s372 = sshll.u32 %s370, 4
          %s373 = int_to_ptr.hbm [resolvable:$true] %s372
          %s374 = sshll.u32 %s358, 4
          %s375 = int_to_ptr.vmem [resolvable:$true] %s374
          %377 = dma.hbm_to_vmem [thread:$0]  %s373, 64, %s375, %s355
        $region44: #{tpu_custom_call.1} parent=35 // pred_fallthru
          _
        // Predicated region
        $region45: #{tpu_custom_call.1} parent=35 // pred_check
          %p378 = pneg %p138
        $region46: #{tpu_custom_call.1} parent=35 // pred_check_branch
          %380 = sbr.rel (%p378) target = $region48
        $region47: #{tpu_custom_call.1} parent=35 // pred_region
          %s381 = sand.u32 %s128, 1
          %s382 = scalar_lea.sflag [#allocation6], %s381
          %s383 = sand.u32 %s128, 1
          %s384 = smul.addr %s383, 4
          %s385 = scalar_lea.vmem [#allocation5], %s384
          %p386 = scmp.eq.s32.totalorder %s36, 0
          %s387 = sadd.s32 %s36, 1
          %s388 = scalar_select %p386, 0, %s387
          %s389 = scalar_select %p386, 2, 0
          %391 = vsyncadd %s382, 0
          %s392 = smul.addr %s388, 4
          %s393 = sadd.s32 %s389, %s392
          %s394 = smul.addr %s35, 4
          %s395 = sadd.s32 %s393, %s394
          %s396 = smul.addr %s395, 4
          %s397 = scalar_lea.hbm %s2, %s396
          %s399 = sshll.u32 %s397, 4
          %s400 = int_to_ptr.hbm [resolvable:$true] %s399
          %s401 = sshll.u32 %s385, 4
          %s402 = int_to_ptr.vmem [resolvable:$true] %s401
          %404 = dma.hbm_to_vmem [thread:$0]  %s400, 64, %s402, %s382
        $region48: #{tpu_custom_call.1} parent=35 // pred_fallthru
          _
      $region36: #{tpu_custom_call.1} parent=5 // pred_fallthru
        _
      %p405 = scmp.le.s32.totalorder 1, %s28
      %p406 = scmp.lt.s32.totalorder %s28, 3
      %p407 = pnand %p405, %p406
      %p408 = pneg %p407
      // Predicated region
      $region49: #{tpu_custom_call.1} parent=5 // pred_check
        _
      $region50: #{tpu_custom_call.1} parent=5 // pred_check_branch
        %410 = sbr.rel (%p407) target = $region52
      $region51: #{tpu_custom_call.1} parent=5 // pred_region
        %s411 = ssub.s32 %s28, 1
        %s412 = sand.u32 %s93, 1
        %s413 = scalar_lea.sflag [#allocation3], %s412
        %s414 = sand.u32 %s93, 1
        %s415 = smul.addr %s414, 4
        %s416 = scalar_lea.vmem [#allocation2], %s415
        // Predicated region
        $region53: #{tpu_custom_call.1} parent=51 // pred_check
          %p417 = pneg %p106
        $region54: #{tpu_custom_call.1} parent=51 // pred_check_branch
          %419 = sbr.rel (%p417) target = $region56
        $region55: #{tpu_custom_call.1} parent=51 // pred_region
          %421 = dma.done %s413, 64
        $region56: #{tpu_custom_call.1} parent=51 // pred_fallthru
          _
        %s422 = sand.u32 %s131, 1
        %s423 = scalar_lea.sflag [#allocation6], %s422
        %s424 = sand.u32 %s131, 1
        %s425 = smul.addr %s424, 4
        %s426 = scalar_lea.vmem [#allocation5], %s425
        // Predicated region
        $region57: #{tpu_custom_call.1} parent=51 // pred_check
          %p427 = pneg %p144
        $region58: #{tpu_custom_call.1} parent=51 // pred_check_branch
          %429 = sbr.rel (%p427) target = $region60
        $region59: #{tpu_custom_call.1} parent=51 // pred_region
          %431 = dma.done %s423, 64
        $region60: #{tpu_custom_call.1} parent=51 // pred_fallthru
          _
        %p432 = scmp.lt.s32.totalorder %s37, 1
        %s433 = scalar_select %p432, %s37, 1
        %p434 = scmp.lt.s32.totalorder %s38, 0
        %s435 = scalar_select %p434, %s38, 0
        %s436 = smul.addr %s435, 3
        %s437 = smul.addr %s433, 3
        %s438 = sadd.s32 %s436, %s437
        %s439 = smul.addr %s438, 4
        %s440 = scalar_lea.vmem %s0, %s439
        %p441 = pneg %p68
        %p442 = pneg %p65
        %s443 = sand.u32 %s93, 1
        %s444 = scalar_lea.sflag [#allocation3], %s443
        %s445 = sand.u32 %s93, 1
        %s446 = smul.addr %s445, 4
        %s447 = scalar_lea.vmem [#allocation2], %s446
        %p448 = pneg %p106
        %p449 = pneg %p103
        %s450 = sand.u32 %s131, 1
        %s451 = scalar_lea.sflag [#allocation6], %s450
        %s452 = sand.u32 %s131, 1
        %s453 = smul.addr %s452, 4
        %s454 = scalar_lea.vmem [#allocation5], %s453
        %p455 = pneg %p144
        %p456 = pneg %p141
        %p457 = pneg %p165
        %p458 = pneg %p162
        %p459 = pneg %p186
        %p460 = pneg %p183
        %p461 = pneg %p207
        %p462 = pneg %p204
        %p463 = pneg %p228
        %p464 = pneg %p225
        %p465 = pneg %p249
        %p466 = pneg %p246
        %p467 = pneg %p277
        %p468 = pneg %p274
        %s469 = sand.u32 %s264, 1
        %s470 = scalar_lea.sflag [#allocation4], %s469
        %s471 = sand.u32 %s264, 1
        %s472 = smul.addr %s471, 12
        %s473 = scalar_lea.vmem [#allocation7], %s472
        %p474 = pneg %p305
        %p475 = pneg %p302
        %s476 = sand.u32 %s292, 1
        %s477 = scalar_lea.sflag [#allocation9], %s476
        %s478 = sand.u32 %s292, 1
        %s479 = smul.addr %s478, 16
        %s480 = scalar_lea.vmem [#allocation8], %s479
        %p481 = scmp.lt.s32.totalorder %s37, 1
        %s482 = scalar_select %p481, %s37, 1
        %p483 = scmp.lt.s32.totalorder %s38, 0
        %s484 = scalar_select %p483, %s38, 0
        %s485 = smul.addr %s484, 3
        %s486 = smul.addr %s482, 3
        %s487 = sadd.s32 %s485, %s486
        %s488 = smul.addr %s487, 4
        %s489 = scalar_lea.vmem %s0, %s488
        %p490 = scmp.eq.s32.totalorder %s38, 0
        %s491 = ssub.s32 %s38, 1
        %s492 = scalar_select %p490, 0, %s491
        %s493 = scalar_select %p490, 1, 3
        %p494 = scmp.eq.s32.totalorder %s38, 0
        %s495 = sadd.s32 %s38, 1
        %s496 = scalar_select %p494, 0, %s495
        %s497 = scalar_select %p494, 2, 0
        %v499 = vld [vmem:[%s416] sm:$0xf]
        %v500 = vld [vmem:[%s489] sm:$0xff]
        %v501 = vld [vmem:[%s489 + $0x8] sm:$0xf]
        %v502 = vld [vmem:[%s426] sm:$0xf]
        %v505 = vunpack.c.l.b16 %v500
        %v506 = vunpack.c.h.b16 %v500
        %v507 = vunpack.c.l.b16 %v501
        %v508 = vpack.c.b16 %v505, %v505
        %v509 = vpack.c.b16 %v506, %v506
        %v510 = vpack.c.b16 %v507, %v507
        %511 = vrot.lane.b32.xlu0 %v508, 18
        %v512 = vpop.permute.xlu0 %511
        %513 = vrot.lane.b32.xlu0 %v509, 18
        %v514 = vpop.permute.xlu0 %513
        %515 = vrot.lane.b32.xlu0 %v510, 18
        %v516 = vpop.permute.xlu0 %515
        %vm517 = vcmask 146432
        %v518 = vsel %vm517, %v512, %v514
        %v519 = vsel %vm517, %v514, %v516
        %v521 = vunpack.c.l.b16 %v502
        %v522 = vpack.c.b16 %v521, %v521
        %523 = vrot.lane.b32.xlu0 %v522, 50
        %v524 = vpop.permute.xlu0 %523
        %vm525 = vcmask 146432
        %v528 = vsel %vm525, %v499, %v512
        %vm529 = vcmask 408576
        %v532 = vsel %vm529, %v519, %v524
        %vm533 = vcmask 556032
        %v535 = vsel %vm533, %v532, 0
        %v538 = vrot.slane %v528, 4
        %v539 = vrot.slane %v518, 4
        %v540 = vrot.slane %v535, 4
        %541 = vrot.lane.b32.xlu0 %v538, 127
        %v542 = vpop.permute.xlu0 %541
        %543 = vrot.lane.b32.xlu0 %v539, 127
        %v544 = vpop.permute.xlu0 %543
        %545 = vrot.lane.b32.xlu0 %v540, 127
        %v546 = vpop.permute.xlu0 %545
        %vm547 = vcmask 1039360
        %v548 = vsel %vm547, %v542, %v544
        %v549 = vsel %vm547, %v544, %v546
        %550 = vrot.lane.b32.xlu0 %v528, 126
        %v551 = vpop.permute.xlu0 %550
        %552 = vrot.lane.b32.xlu0 %v518, 126
        %v553 = vpop.permute.xlu0 %552
        %554 = vrot.lane.b32.xlu0 %v535, 126
        %v555 = vpop.permute.xlu0 %554
        %vm556 = vcmask 1031168
        %v557 = vsel %vm556, %v551, %v553
        %v558 = vsel %vm556, %v553, %v555
        %559 = vrot.lane.b32.xlu0 %v538, 110
        %v560 = vpop.permute.xlu0 %559
        %561 = vrot.lane.b32.xlu0 %v539, 110
        %v562 = vpop.permute.xlu0 %561
        %563 = vrot.lane.b32.xlu0 %v540, 110
        %v564 = vpop.permute.xlu0 %563
        %vm565 = vcmask 900096
        %v566 = vsel %vm565, %v560, %v562
        %v567 = vsel %vm565, %v562, %v564
        %568 = vrot.lane.b32.xlu0 %v528, 109
        %v569 = vpop.permute.xlu0 %568
        %570 = vrot.lane.b32.xlu0 %v518, 109
        %v571 = vpop.permute.xlu0 %570
        %572 = vrot.lane.b32.xlu0 %v535, 109
        %v573 = vpop.permute.xlu0 %572
        %vm574 = vcmask 891904
        %v575 = vsel %vm574, %v569, %v571
        %v576 = vsel %vm574, %v571, %v573
        %577 = vrot.lane.b32.xlu0 %v538, 108
        %v578 = vpop.permute.xlu0 %577
        %579 = vrot.lane.b32.xlu0 %v539, 108
        %v580 = vpop.permute.xlu0 %579
        %581 = vrot.lane.b32.xlu0 %v540, 108
        %v582 = vpop.permute.xlu0 %581
        %vm583 = vcmask 883712
        %v584 = vsel %vm583, %v578, %v580
        %v585 = vsel %vm583, %v580, %v582
        %586 = vrot.lane.b32.xlu0 %v528, 92
        %v587 = vpop.permute.xlu0 %586
        %588 = vrot.lane.b32.xlu0 %v518, 92
        %v589 = vpop.permute.xlu0 %588
        %590 = vrot.lane.b32.xlu0 %v535, 92
        %v591 = vpop.permute.xlu0 %590
        %vm592 = vcmask 752640
        %v593 = vsel %vm592, %v587, %v589
        %v594 = vsel %vm592, %v589, %v591
        %595 = vrot.lane.b32.xlu0 %v538, 91
        %v596 = vpop.permute.xlu0 %595
        %597 = vrot.lane.b32.xlu0 %v539, 91
        %v598 = vpop.permute.xlu0 %597
        %599 = vrot.lane.b32.xlu0 %v540, 91
        %v600 = vpop.permute.xlu0 %599
        %vm601 = vcmask 744448
        %v602 = vsel %vm601, %v596, %v598
        %v603 = vsel %vm601, %v598, %v600
        %604 = vrot.lane.b32.xlu0 %v528, 90
        %v605 = vpop.permute.xlu0 %604
        %606 = vrot.lane.b32.xlu0 %v518, 90
        %v607 = vpop.permute.xlu0 %606
        %608 = vrot.lane.b32.xlu0 %v535, 90
        %v609 = vpop.permute.xlu0 %608
        %vm610 = vcmask 736256
        %v611 = vsel %vm610, %v605, %v607
        %v612 = vsel %vm610, %v607, %v609
        %vm613 = vcmask 1043456
        %v615 = vsel %vm613, %v528, %v548
        %v619 = vsel %vm613, %v518, %v549
        %v622 = vsel %vm613, %v535, %v546
        %v626 = vsel %vm613, %v557, %v566
        %v630 = vsel %vm613, %v558, %v567
        %v634 = vsel %vm613, %v555, %v564
        %v638 = vsel %vm613, %v575, %v584
        %v642 = vsel %vm613, %v576, %v585
        %v646 = vsel %vm613, %v573, %v582
        %v650 = vsel %vm613, %v593, %v602
        %v654 = vsel %vm613, %v594, %v603
        %v658 = vsel %vm613, %v591, %v600
        %v660 = vld [vmem:[%s3] sm:$0xf]
        %v661 = vld [vmem:[%s4] sm:$0xff]
        %663 = vset.pattern.permute.xlu0 0
        %664 = vperm.xlu0 %663, %v661
        %v665 = vpop.permute.xlu0 %664
        %vm667 = vcmask 588800
        %v669 = vsel %vm667, %v660, 0
        %v672 = vsel %vm613, %v611, 0
        %v675 = vsel %vm613, %v612, 0
        %v678 = vsel %vm613, %v609, 0
        %680 = vmatpush.bf16.msra.mxu0 0
        %681 = vmatpush.bf16.msra.mxu0 0
        %682 = vmatpush.bf16.msra.mxu0 0
        %683 = vmatpush.bf16.msra.mxu0 %v672
        %684 = vmatpush.bf16.msra.mxu0 %v650
        %685 = vmatpush.bf16.msra.mxu0 %v638
        %686 = vmatpush.bf16.msra.mxu0 %v626
        %687 = vmatpush.bf16.msra.mxu0 %v615
        %688 = vmatmul.bf16.gmra.mxu0 %v669
        %v689 = vpop.f32.mrf.mxu0
        %v690 = vadd.f32 %v665, %v689
        %v691 = vpop.f32.mrf.mxu0
        %692 = vdwg.mxu0
        %693 = vmatpush.bf16.msra.mxu0 0
        %694 = vmatpush.bf16.msra.mxu0 0
        %695 = vmatpush.bf16.msra.mxu0 0
        %696 = vmatpush.bf16.msra.mxu0 %v675
        %697 = vmatpush.bf16.msra.mxu0 %v654
        %698 = vmatpush.bf16.msra.mxu0 %v642
        %699 = vmatpush.bf16.msra.mxu0 %v630
        %700 = vmatpush.bf16.msra.mxu0 %v619
        %701 = vmatmul.bf16.gmra.mxu0 %v669
        %v702 = vpop.f32.mrf.mxu0
        %v703 = vadd.f32 %v665, %v702
        %v704 = vpop.f32.mrf.mxu0
        %705 = vdwg.mxu0
        %706 = vmatpush.bf16.msra.mxu0 0
        %707 = vmatpush.bf16.msra.mxu0 0
        %708 = vmatpush.bf16.msra.mxu0 0
        %709 = vmatpush.bf16.msra.mxu0 %v678
        %710 = vmatpush.bf16.msra.mxu0 %v658
        %711 = vmatpush.bf16.msra.mxu0 %v646
        %712 = vmatpush.bf16.msra.mxu0 %v634
        %713 = vmatpush.bf16.msra.mxu0 %v622
        %714 = vmatmul.bf16.gmra.mxu0 %v669
        %v715 = vpop.f32.mrf.mxu0
        %v716 = vadd.f32 %v665, %v715
        %v717 = vpop.f32.mrf.mxu0
        %718 = vdwg.mxu0
        %v719 = vrot.slane %v690, 4
        %v720 = vadd.f32 %v690, %v719
        %v721 = vrot.slane %v720, 2
        %v722 = vadd.f32 %v720, %v721
        %v723 = vrot.slane %v722, 1
        %v724 = vadd.f32 %v722, %v723
        %v725 = vrot.slane %v703, 4
        %v726 = vadd.f32 %v703, %v725
        %v727 = vrot.slane %v726, 2
        %v728 = vadd.f32 %v726, %v727
        %v729 = vrot.slane %v728, 1
        %v730 = vadd.f32 %v728, %v729
        %vm731 = vcmask 261120
        %v732 = vsel %vm731, %v716, 0.0
        %v733 = vrot.slane %v732, 4
        %v734 = vadd.f32 %v732, %v733
        %v735 = vrot.slane %v734, 2
        %v736 = vadd.f32 %v734, %v735
        %v737 = vrot.slane %v736, 1
        %v738 = vadd.f32 %v736, %v737
        %v739 = vrcp.pop 8.0
        %v740 = vmul.f32 8.0, %v739
        %v741 = vsub.f32 1.0, %v740
        %v742 = vmul.f32 %v739, %v741
        %v743 = vadd.f32 %v739, %v742
        %vm744 = vweird.f32 %v739
        %v745 = vsel %vm744, %v739, %v743
        %v746 = vmul.f32 %v724, %v745
        %v747 = vmul.f32 %v730, %v745
        %v748 = vmul.f32 %v738, %v745
        %v749 = vsub.f32 %v690, %v746
        %v750 = vsub.f32 %v703, %v747
        %v751 = vsub.f32 %v716, %v748
        %v752 = vmul.f32 %v749, %v749
        %v753 = vmul.f32 %v750, %v750
        %v754 = vmul.f32 %v751, %v751
        %v755 = vrot.slane %v752, 4
        %v756 = vadd.f32 %v752, %v755
        %v757 = vrot.slane %v756, 2
        %v758 = vadd.f32 %v756, %v757
        %v759 = vrot.slane %v758, 1
        %v760 = vadd.f32 %v758, %v759
        %v761 = vrot.slane %v753, 4
        %v762 = vadd.f32 %v753, %v761
        %v763 = vrot.slane %v762, 2
        %v764 = vadd.f32 %v762, %v763
        %v765 = vrot.slane %v764, 1
        %v766 = vadd.f32 %v764, %v765
        %v767 = vsel %vm731, %v754, 0.0
        %v768 = vrot.slane %v767, 4
        %v769 = vadd.f32 %v767, %v768
        %v770 = vrot.slane %v769, 2
        %v771 = vadd.f32 %v769, %v770
        %v772 = vrot.slane %v771, 1
        %v773 = vadd.f32 %v771, %v772
        %v774 = vmul.f32 %v760, 0.14285715
        %v775 = vmul.f32 %v766, 0.14285715
        %v776 = vmul.f32 %v773, 0.14285715
        %v777 = vld [vmem:[%s5] sm:$0xff]
        %v778 = vadd.f32 %v774, 0.001
        %v779 = vadd.f32 %v775, 0.001
        %v780 = vadd.f32 %v776, 0.001
        %v781 = vrsqrt.pop %v778
        %v782 = vmul.f32 %v781, %v778
        %v783 = vmul.f32 %v782, %v781
        %v784 = vmul.f32 0.5, %v783
        %v785 = vsub.f32 1.5, %v784
        %v786 = vmul.f32 %v781, %v785
        %vm787 = vweird.f32 %v778
        %vm788 = vweird.f32 %v781
        %vm789 = vmor %vm787, %vm788
        %v790 = vsel %vm789, %v781, %v786
        %v791 = vrsqrt.pop %v779
        %v792 = vmul.f32 %v791, %v779
        %v793 = vmul.f32 %v792, %v791
        %v794 = vmul.f32 0.5, %v793
        %v795 = vsub.f32 1.5, %v794
        %v796 = vmul.f32 %v791, %v795
        %vm797 = vweird.f32 %v779
        %vm798 = vweird.f32 %v791
        %vm799 = vmor %vm797, %vm798
        %v800 = vsel %vm799, %v791, %v796
        %v801 = vrsqrt.pop %v780
        %v802 = vmul.f32 %v801, %v780
        %v803 = vmul.f32 %v802, %v801
        %v804 = vmul.f32 0.5, %v803
        %v805 = vsub.f32 1.5, %v804
        %v806 = vmul.f32 %v801, %v805
        %vm807 = vweird.f32 %v780
        %vm808 = vweird.f32 %v801
        %vm809 = vmor %vm807, %vm808
        %v810 = vsel %vm809, %v801, %v806
        %v811 = vmul.f32 %v749, %v790
        %v812 = vmul.f32 %v750, %v800
        %v813 = vmul.f32 %v751, %v810
        %815 = vset.pattern.permute.xlu0 0
        %816 = vperm.xlu0 %815, %v777
        %v817 = vpop.permute.xlu0 %816
        %v819 = vmul.f32 %v817, %v811
        %v820 = vmul.f32 %v817, %v812
        %v821 = vmul.f32 %v817, %v813
        %v822 = vld [vmem:[%s6] sm:$0xff]
        %824 = vset.pattern.permute.xlu0 0
        %825 = vperm.xlu0 %824, %v822
        %v826 = vpop.permute.xlu0 %825
        %v828 = vadd.f32 %v819, %v826
        %v829 = vadd.f32 %v820, %v826
        %v830 = vadd.f32 %v821, %v826
        %v831 = vmax.f32 %v828, 0.0
        %v832 = vmax.f32 %v829, 0.0
        %v833 = vmax.f32 %v830, 0.0
        %837 = vrot.lane.b32.xlu0 %v831, 1
        %v838 = vpop.permute.xlu0 %837
        %839 = vrot.lane.b32.xlu0 %v832, 1
        %v840 = vpop.permute.xlu0 %839
        %841 = vrot.lane.b32.xlu0 %v833, 1
        %v842 = vpop.permute.xlu0 %841
        %vm843 = vcmask 7168
        %v844 = vsel %vm843, %v838, %v840
        %v845 = vsel %vm843, %v840, %v842
        %v849 = vsel %vm843, %v831, %v838
        %850 = vrot.lane.b32.xlu0 %v831, 127
        %v851 = vpop.permute.xlu0 %850
        %852 = vrot.lane.b32.xlu0 %v832, 127
        %v853 = vpop.permute.xlu0 %852
        %854 = vrot.lane.b32.xlu0 %v833, 127
        %v855 = vpop.permute.xlu0 %854
        %vm856 = vcmask 1039360
        %v857 = vsel %vm856, %v851, %v853
        %v858 = vsel %vm856, %v853, %v855
        %vm862 = vcmask 252928
        %v863 = vsel %vm862, %v855, %v833
        %864 = vrot.lane.b32.xlu0 %v831, 3
        %v865 = vpop.permute.xlu0 %864
        %866 = vrot.lane.b32.xlu0 %v832, 3
        %v867 = vpop.permute.xlu0 %866
        %868 = vrot.lane.b32.xlu0 %v833, 3
        %v869 = vpop.permute.xlu0 %868
        %vm870 = vcmask 23552
        %v871 = vsel %vm870, %v865, %v867
        %v872 = vsel %vm870, %v867, %v869
        %v876 = vsel %vm870, %v831, %v865
        %v877 = vld [vmem:[%s7] sm:$0x7]
        %vm878 = vcmp.eq.s32.totalorder %v877, 0
        %vm879 = vcmp.eq.s32.totalorder %v877, 17
        %v880 = vsel %vm879, 1, 0
        %v881 = vperm.slane %v880, 0
        %v882 = vperm.slane %v880, 1
        %v883 = vperm.slane %v880, 2
        %vm884 = vcmp.eq.s32.totalorder %v881, 1
        %vm885 = vcmp.eq.s32.totalorder %v882, 1
        %vm886 = vcmp.eq.s32.totalorder %v883, 1
        %v887 = vsel %vm884, %v876, %v849
        %v888 = vsel %vm885, %v871, %v844
        %v889 = vsel %vm886, %v872, %v845
        %v890 = vsel %vm878, 1, 0
        %v891 = vperm.slane %v890, 0
        %v892 = vperm.slane %v890, 1
        %v893 = vperm.slane %v890, 2
        %vm894 = vcmp.eq.s32.totalorder %v891, 1
        %vm895 = vcmp.eq.s32.totalorder %v892, 1
        %vm896 = vcmp.eq.s32.totalorder %v893, 1
        %v897 = vsel %vm894, %v857, %v887
        %v898 = vsel %vm895, %v858, %v888
        %v899 = vsel %vm896, %v863, %v889
        %v900 = vpack.c.bf16 %v898, %v897
        %v901 = vpack.c.bf16 %v899, %v899
        %902 = vst [vmem:[%s473] sm:$0xff] %v900
        %vm903 = vcmask 257024
        %904 = vst.msk [vmem:[%s473 + $0x8] sm:$0xf] %vm903, %v901
        %vm905 = vcmask 142336
        %906 = vst.msk [vmem:[%s480] sm:$0xf] %vm905, %v900
        %908 = vrot.lane.b32.xlu0 %v900, 110
        %v909 = vpop.permute.xlu0 %908
        %s911 = scalar_lea.vmem %s480, 4 [#allocation8]
        %912 = vst.msk [vmem:[%s911] sm:$0xf] %vm905, %v909
        %914 = vrot.lane.b32.xlu0 %v900, 4
        %v915 = vpop.permute.xlu0 %914
        %916 = vrot.lane.b32.xlu0 %v901, 4
        %v917 = vpop.permute.xlu0 %916
        %v918 = vrot.slane %v915, 4
        %vm919 = vcmask 31744
        %v920 = vsel %vm919, %v918, %v917
        %s922 = scalar_lea.vmem %s480, 8 [#allocation8]
        %923 = vst.msk [vmem:[%s922] sm:$0xf] %vm905, %v920
        %924 = vrot.lane.b32.xlu0 %v901, 114
        %v925 = vpop.permute.xlu0 %924
        %s927 = scalar_lea.vmem %s480, 12 [#allocation8]
        %928 = vst.msk [vmem:[%s927] sm:$0xf] %vm905, %v925
        %s929 = sand.u32 %s264, 1
        %s930 = scalar_lea.sflag [#allocation4], %s929
        %s931 = sand.u32 %s264, 1
        %s932 = smul.addr %s931, 12
        %s933 = scalar_lea.vmem [#allocation7], %s932
        %s934 = sand.u32 %s292, 1
        %s935 = scalar_lea.sflag [#allocation9], %s934
        %s936 = sand.u32 %s292, 1
        %s937 = smul.addr %s936, 16
        %s938 = scalar_lea.vmem [#allocation8], %s937
        // Predicated region
        $region61: #{tpu_custom_call.1} parent=51 // pred_check
          %p939 = pneg %p274
        $region62: #{tpu_custom_call.1} parent=51 // pred_check_branch
          %941 = sbr.rel (%p939) target = $region64
        $region63: #{tpu_custom_call.1} parent=51 // pred_region
          %943 = vsyncadd %s930, 0
          %s944 = smul.addr %s38, 3
          %s945 = smul.addr %s37, 3
          %s946 = sadd.s32 %s944, %s945
          %s947 = smul.addr %s946, 4
          %s948 = scalar_lea.hbm %s8, %s947
          %s950 = sshll.u32 %s933, 4
          %s951 = int_to_ptr.vmem [resolvable:$true] %s950
          %s952 = sshll.u32 %s948, 4
          %s953 = int_to_ptr.hbm [resolvable:$true] %s952
          %955 = dma.vmem_to_hbm [thread:$0]  %s951, 192, %s953, %s930
        $region64: #{tpu_custom_call.1} parent=51 // pred_fallthru
          _
        // Predicated region
        $region65: #{tpu_custom_call.1} parent=51 // pred_check
          %p956 = pneg %p302
        $region66: #{tpu_custom_call.1} parent=51 // pred_check_branch
          %958 = sbr.rel (%p956) target = $region68
        $region67: #{tpu_custom_call.1} parent=51 // pred_region
          %960 = vsyncadd %s935, 0
          %s961 = smul.addr %s38, 4
          %s962 = smul.addr %s37, 4
          %s963 = sadd.s32 %s961, %s962
          %s964 = smul.addr %s963, 4
          %s965 = scalar_lea.hbm %s9, %s964
          %s966 = sshll.u32 %s938, 4
          %s967 = int_to_ptr.vmem [resolvable:$true] %s966
          %s968 = sshll.u32 %s965, 4
          %s969 = int_to_ptr.hbm [resolvable:$true] %s968
          %974 = dma.vmem_to_hbm [thread:$0]  %s967, 256, %s969, %s935, 64, 64, 4
        $region68: #{tpu_custom_call.1} parent=51 // pred_fallthru
          _
      $region52: #{tpu_custom_call.1} parent=5 // pred_fallthru
        _
      %p975 = scmp.le.s32.totalorder 2, %s28
      // Predicated region
      $region69: #{tpu_custom_call.1} parent=5 // pred_check
        %p976 = pneg %p975
      $region70: #{tpu_custom_call.1} parent=5 // pred_check_branch
        %978 = sbr.rel (%p976) target = $region72
      $region71: #{tpu_custom_call.1} parent=5 // pred_region
        %s979 = ssub.s32 %s28, 2
        // Predicated region
        $region73: #{tpu_custom_call.1} parent=71 // pred_check
          %p980 = pneg %p280
        $region74: #{tpu_custom_call.1} parent=71 // pred_check_branch
          %982 = sbr.rel (%p980) target = $region76
        $region75: #{tpu_custom_call.1} parent=71 // pred_region
          %s983 = sand.u32 %s265, 1
          %s984 = scalar_lea.sflag [#allocation4], %s983
          %s985 = sand.u32 %s265, 1
          %s986 = smul.addr %s985, 12
          %s987 = scalar_lea.vmem [#allocation7], %s986
          %989 = dma.done %s984, 192
        $region76: #{tpu_custom_call.1} parent=71 // pred_fallthru
          _
        // Predicated region
        $region77: #{tpu_custom_call.1} parent=71 // pred_check
          %p990 = pneg %p308
        $region78: #{tpu_custom_call.1} parent=71 // pred_check_branch
          %992 = sbr.rel (%p990) target = $region80
        $region79: #{tpu_custom_call.1} parent=71 // pred_region
          %s993 = sand.u32 %s293, 1
          %s994 = scalar_lea.sflag [#allocation9], %s993
          %s995 = sand.u32 %s293, 1
          %s996 = smul.addr %s995, 16
          %s997 = scalar_lea.vmem [#allocation8], %s996
          %999 = dma.done %s994, 256
        $region80: #{tpu_custom_call.1} parent=71 // pred_fallthru
          _
      $region72: #{tpu_custom_call.1} parent=5 // pred_fallthru
        _
    $region6: #{tpu_custom_call.1} parent=1 // loop_footer
      %s32 = sadd.s32 1, %s28
    $region7: #{tpu_custom_call.1} parent=1 // loop_footer_branch
      %27 = sbr.rel target = $region3
    $region8: #{tpu_custom_call.1} parent=1 // loop_exit
      _
    %1000 = vsyncpa [#allocation3], 1
    %s1001 = scalar_lea.sflag [#allocation3], 1
    %1002 = vsyncpa %s1001, 1
    %1003 = vsyncpa [#allocation6], 1
    %s1004 = scalar_lea.sflag [#allocation6], 1
    %1005 = vsyncpa %s1004, 1
    %1006 = vsyncpa [#allocation4], 1
    %s1007 = scalar_lea.sflag [#allocation4], 1
    %1008 = vsyncpa %s1007, 1
    %1009 = vsyncpa [#allocation9], 1
    %s1010 = scalar_lea.sflag [#allocation9], 1
    %1011 = vsyncpa %s1010, 1

</llo_original>
